<compile_context>
chip_gen: v6e
topology: v6e:2x2x1
jax: 0.10.0
libtpu: 0.0.40
codegen_flags: <defaults>
</compile_context>

<pallas_src>
import functools

import jax
import jax.numpy as jnp
from jax import lax
from jax.experimental import pallas as pl
from jax.experimental.pallas import tpu as pltpu


def _round_up(x, m):
    return (x + m - 1) // m * m


def _pick_tile_h(Ho, Wo):
    """Largest divisor of Ho with TH*Wo ~ 128 rows for the MXU M dim."""
    target = max(1, min(Ho, 128 // max(Wo, 1)))
    for t in range(target, 0, -1):
        if Ho % t == 0:
            return t
    return 1


def _sepconv_kernel(x_ref, wdw_ref, wpw_ref, o_ref, *, K, TH, Wo, Cp, Cop):
    """One (batch, H-tile) program.

    x_ref:   (1, Hp, Wp, Cp)   zero-padded NHWC image, resident per batch elem
    wdw_ref: (K*K, Cp)         depthwise weights, channel-padded
    wpw_ref: (Cp, Cop)         pointwise weights, channel-padded
    o_ref:   (1, TH, Wo, Cop)  output tile (TH output rows)
    """
    i = pl.program_id(1)
    h0 = pl.multiple_of(i * TH, TH)          # first output row of this tile

    # Hoist weight loads out of the K*K tap loop (JAX does not CSE these).
    wdw = wdw_ref[...].astype(jnp.float32)   # (K*K, Cp)
    wpw = wpw_ref[...]                       # (Cp, Cop)

    # ---- depthwise KxK conv: f32 accumulate over taps (VPU, lane-dense) ----
    acc = jnp.zeros((TH, Wo, Cp), jnp.float32)
    for kh in range(K):
        # One row-band load per kh; H offset is a cheap major-dim slice.
        rows = x_ref[0, pl.ds(h0 + kh, TH), :, :].astype(jnp.float32)  # (TH, Wp, Cp)
        for kw in range(K):
            w = wdw[kh * K + kw, :]                                    # (Cp,)
            acc = acc + rows[:, kw:kw + Wo, :] * w[None, None, :]

    # ---- pointwise 1x1 conv: lane-dense MXU matmul, M=TH*Wo, K=Cp, N=Cop ----
    lhs = acc.reshape(TH * Wo, Cp).astype(wpw.dtype)   # layout-preserving reshape
    out = jnp.dot(lhs, wpw, preferred_element_type=jnp.float32)        # (TH*Wo, Cop)
    o_ref[...] = out.reshape(1, TH, Wo, Cop).astype(o_ref.dtype)
    # TODO(synk): optional norm_layer / activation epilogue of the nn.Sequential
    # (module defaults are None) would go here as an elementwise tail.


def separable_conv2d(x_nchw, w_dw, w_pw, *, dw_kernel, dw_padding, dw_stride=1):
    """x_nchw: (N, Cin, H, W); w_dw: (K, K, Cin); w_pw: (Cin, Cout)."""
    # TODO(synk): dw_stride != 1 is not implemented (module default is 1).
    assert dw_stride == 1, "only the module-default stride=1 is implemented"
    N, Cin, H, W = x_nchw.shape
    K = dw_kernel
    P = dw_padding
    Cout = w_pw.shape[1]
    Ho = H + 2 * P - K + 1
    Wo = W + 2 * P - K + 1
    Hp = Ho + K - 1
    Wp = Wo + K - 1

    # Lane-dense channel padding (multiples of 128 lanes).
    Cp = _round_up(Cin, 128)
    Cop = _round_up(Cout, 128)

    TH = _pick_tile_h(Ho, Wo)
    nH = Ho // TH

    # Glue (single fused XLA pass): NCHW -> NHWC, spatial zero-pad by P, and
    # channel zero-pad to Cp.
    x_nhwc = jnp.transpose(x_nchw, (0, 2, 3, 1))
    x_pad = jnp.pad(x_nhwc, ((0, 0), (P, P), (P, P), (0, Cp - Cin)))

    wdw_p = jnp.pad(w_dw.reshape(K * K, Cin), ((0, 0), (0, Cp - Cin)))
    wpw_p = jnp.pad(w_pw, ((0, Cp - Cin), (0, Cop - Cout)))

    kernel = functools.partial(_sepconv_kernel, K=K, TH=TH, Wo=Wo, Cp=Cp, Cop=Cop)

    itemsize = jnp.dtype(x_nchw.dtype).itemsize
    flops = 2 * N * Ho * Wo * (K * K * Cin + Cin * Cout)
    bytes_accessed = (N * Hp * Wp * Cp * itemsize
                      + K * K * Cp * itemsize
                      + Cp * Cop * itemsize
                      + N * Ho * Wo * Cop * itemsize)

    out_nhwc = pl.pallas_call(
        kernel,
        out_shape=jax.ShapeDtypeStruct((N, Ho, Wo, Cop), x_nchw.dtype),
        grid_spec=pltpu.PrefetchScalarGridSpec(
            num_scalar_prefetch=0,
            grid=(N, nH),
            in_specs=[
                # Full padded image per batch element; index map ignores the
                # H-tile index -> one DMA per image, block reused across tiles.
                pl.BlockSpec((1, Hp, Wp, Cp), lambda b, i: (b, 0, 0, 0)),
                pl.BlockSpec((K * K, Cp), lambda b, i: (0, 0)),
                pl.BlockSpec((Cp, Cop), lambda b, i: (0, 0)),
            ],
            out_specs=pl.BlockSpec((1, TH, Wo, Cop), lambda b, i: (b, i, 0, 0)),
        ),
        compiler_params=pltpu.CompilerParams(
            dimension_semantics=("parallel", "parallel"),
            vmem_limit_bytes=32 * 1024 * 1024),
        cost_estimate=pl.CostEstimate(
            flops=flops, transcendentals=0, bytes_accessed=bytes_accessed),
    )(x_pad, wdw_p, wpw_p)

    # Drop padded output channels, back to NCHW (PyTorch convention).
    return jnp.transpose(out_nhwc[..., :Cout], (0, 3, 1, 2))


def _reference(x_nchw, w_dw, w_pw, *, dw_padding):
    """Pure-JAX reference (lax conv) with PyTorch semantics, NCHW."""
    Cin = x_nchw.shape[1]
    # depthwise: PyTorch weight layout (Cin, 1, K, K), feature_group_count=Cin
    w_dw_oihw = jnp.transpose(w_dw, (2, 0, 1))[:, None, :, :]
    y = lax.conv_general_dilated(
        x_nchw, w_dw_oihw, window_strides=(1, 1),
        padding=((dw_padding, dw_padding), (dw_padding, dw_padding)),
        dimension_numbers=("NCHW", "OIHW", "NCHW"),
        feature_group_count=Cin)
    # pointwise: PyTorch weight layout (Cout, Cin, 1, 1)
    w_pw_oihw = jnp.transpose(w_pw, (1, 0))[:, :, None, None]
    y = lax.conv_general_dilated(
        y, w_pw_oihw, window_strides=(1, 1), padding="VALID",
        dimension_numbers=("NCHW", "OIHW", "NCHW"))
    return y


if __name__ == "__main__":
    # Small shapes consistent with the module: batch=2, in_ch=4, out_ch=8,
    # spatial=16, dw_kernel=3, dw_padding=1, stride=1, no bias/norm/activation.
    N, Cin, H, W = 2, 4, 16, 16
    K, P = 3, 1
    Cout = 8

    key = jax.random.PRNGKey(0)
    kx, kd, kp = jax.random.split(key, 3)
    x = jax.random.normal(kx, (N, Cin, H, W), jnp.float32)
    w_dw = jax.random.normal(kd, (K, K, Cin), jnp.float32) * 0.1   # depthwise
    w_pw = jax.random.normal(kp, (Cin, Cout), jnp.float32) * 0.1   # pointwise

    out = separable_conv2d(x, w_dw, w_pw, dw_kernel=K, dw_padding=P)
    out = jax.block_until_ready(out)

    ref = _reference(x, w_dw, w_pw, dw_padding=P)
    assert out.shape == (N, Cout, H, W), out.shape
    assert jnp.allclose(out, ref, atol=1e-4, rtol=1e-4), \
        float(jnp.max(jnp.abs(out - ref)))

    print("KERNEL_OK")
</pallas_src>

<mosaic_0001>
module attributes {stable_mosaic.version = 11 : i64} {
  func.func @_sepconv_kernel(%arg0: i32, %arg1: i32, %arg2: memref<1x18x18x128xf32, #tpu.memory_space<vmem>>, %arg3: memref<9x128xf32, #tpu.memory_space<vmem>>, %arg4: memref<128x128xf32, #tpu.memory_space<vmem>>, %arg5: memref<1x8x16x128xf32, #tpu.memory_space<vmem>>) attributes {dimension_semantics = [#tpu.dimension_semantics<parallel>, #tpu.dimension_semantics<parallel>], iteration_bounds = array<i64: 2, 2>, scalar_prefetch = 0 : i64, scratch_operands = 0 : i64, tpu.core_type = #tpu.core_type<tc>, window_params = [{transform_indices = @transform_0, window_bounds = array<i64: 1, 18, 18, 128>}, {pipeline_mode = #tpu.pipeline_mode<synchronous>, transform_indices = @transform_1, window_bounds = array<i64: 9, 128>}, {pipeline_mode = #tpu.pipeline_mode<synchronous>, transform_indices = @transform_2, window_bounds = array<i64: 128, 128>}, {transform_indices = @transform_3, window_bounds = array<i64: 1, 8, 16, 128>}]} {
    %c8_i32 = arith.constant 8 : i32
    %0 = arith.muli %arg1, %c8_i32 : i32
    %1 = tpu.assume_multiple %0, 8 : i32
    %c0 = arith.constant 0 : index
    %c0_0 = arith.constant 0 : index
    %2 = vector.load %arg3[%c0, %c0_0] : memref<9x128xf32, #tpu.memory_space<vmem>>, vector<9x128xf32>
    %c0_1 = arith.constant 0 : index
    %c0_2 = arith.constant 0 : index
    %3 = vector.load %arg4[%c0_1, %c0_2] : memref<128x128xf32, #tpu.memory_space<vmem>>, vector<128x128xf32>
    %cst = arith.constant 0.000000e+00 : f32
    %4 = vector.broadcast %cst : f32 to vector<8x16x128xf32>
    %c0_i32 = arith.constant 0 : i32
    %5 = arith.addi %1, %c0_i32 : i32
    %c0_3 = arith.constant 0 : index
    %6 = arith.index_cast %5 : i32 to index
    %c0_4 = arith.constant 0 : index
    %c0_5 = arith.constant 0 : index
    %7 = vector.load %arg2[%c0_3, %6, %c0_4, %c0_5] : memref<1x18x18x128xf32, #tpu.memory_space<vmem>>, vector<1x8x18x128xf32>
    %8 = vector.shape_cast %7 : vector<1x8x18x128xf32> to vector<8x18x128xf32>
    %9 = vector.extract_strided_slice %2 {offsets = [0, 0], sizes = [1, 128], strides = [1, 1]} : vector<9x128xf32> to vector<1x128xf32>
    %10 = vector.shape_cast %9 : vector<1x128xf32> to vector<128xf32>
    %11 = vector.extract_strided_slice %8 {offsets = [0, 0, 0], sizes = [8, 16, 128], strides = [1, 1, 1]} : vector<8x18x128xf32> to vector<8x16x128xf32>
    %12 = vector.shape_cast %10 : vector<128xf32> to vector<1x1x128xf32>
    %13 = vector.broadcast %12 : vector<1x1x128xf32> to vector<8x16x128xf32>
    %14 = arith.mulf %11, %13 : vector<8x16x128xf32>
    %15 = arith.addf %4, %14 : vector<8x16x128xf32>
    %16 = vector.extract_strided_slice %2 {offsets = [1, 0], sizes = [1, 128], strides = [1, 1]} : vector<9x128xf32> to vector<1x128xf32>
    %17 = vector.shape_cast %16 : vector<1x128xf32> to vector<128xf32>
    %18 = vector.extract_strided_slice %8 {offsets = [0, 1, 0], sizes = [8, 16, 128], strides = [1, 1, 1]} : vector<8x18x128xf32> to vector<8x16x128xf32>
    %19 = vector.shape_cast %17 : vector<128xf32> to vector<1x1x128xf32>
    %20 = vector.broadcast %19 : vector<1x1x128xf32> to vector<8x16x128xf32>
    %21 = arith.mulf %18, %20 : vector<8x16x128xf32>
    %22 = arith.addf %15, %21 : vector<8x16x128xf32>
    %23 = vector.extract_strided_slice %2 {offsets = [2, 0], sizes = [1, 128], strides = [1, 1]} : vector<9x128xf32> to vector<1x128xf32>
    %24 = vector.shape_cast %23 : vector<1x128xf32> to vector<128xf32>
    %25 = vector.extract_strided_slice %8 {offsets = [0, 2, 0], sizes = [8, 16, 128], strides = [1, 1, 1]} : vector<8x18x128xf32> to vector<8x16x128xf32>
    %26 = vector.shape_cast %24 : vector<128xf32> to vector<1x1x128xf32>
    %27 = vector.broadcast %26 : vector<1x1x128xf32> to vector<8x16x128xf32>
    %28 = arith.mulf %25, %27 : vector<8x16x128xf32>
    %29 = arith.addf %22, %28 : vector<8x16x128xf32>
    %c1_i32 = arith.constant 1 : i32
    %30 = arith.addi %1, %c1_i32 : i32
    %c0_6 = arith.constant 0 : index
    %31 = arith.index_cast %30 : i32 to index
    %c0_7 = arith.constant 0 : index
    %c0_8 = arith.constant 0 : index
    %32 = vector.load %arg2[%c0_6, %31, %c0_7, %c0_8] : memref<1x18x18x128xf32, #tpu.memory_space<vmem>>, vector<1x8x18x128xf32>
    %33 = vector.shape_cast %32 : vector<1x8x18x128xf32> to vector<8x18x128xf32>
    %34 = vector.extract_strided_slice %2 {offsets = [3, 0], sizes = [1, 128], strides = [1, 1]} : vector<9x128xf32> to vector<1x128xf32>
    %35 = vector.shape_cast %34 : vector<1x128xf32> to vector<128xf32>
    %36 = vector.extract_strided_slice %33 {offsets = [0, 0, 0], sizes = [8, 16, 128], strides = [1, 1, 1]} : vector<8x18x128xf32> to vector<8x16x128xf32>
    %37 = vector.shape_cast %35 : vector<128xf32> to vector<1x1x128xf32>
    %38 = vector.broadcast %37 : vector<1x1x128xf32> to vector<8x16x128xf32>
    %39 = arith.mulf %36, %38 : vector<8x16x128xf32>
    %40 = arith.addf %29, %39 : vector<8x16x128xf32>
    %41 = vector.extract_strided_slice %2 {offsets = [4, 0], sizes = [1, 128], strides = [1, 1]} : vector<9x128xf32> to vector<1x128xf32>
    %42 = vector.shape_cast %41 : vector<1x128xf32> to vector<128xf32>
    %43 = vector.extract_strided_slice %33 {offsets = [0, 1, 0], sizes = [8, 16, 128], strides = [1, 1, 1]} : vector<8x18x128xf32> to vector<8x16x128xf32>
    %44 = vector.shape_cast %42 : vector<128xf32> to vector<1x1x128xf32>
    %45 = vector.broadcast %44 : vector<1x1x128xf32> to vector<8x16x128xf32>
    %46 = arith.mulf %43, %45 : vector<8x16x128xf32>
    %47 = arith.addf %40, %46 : vector<8x16x128xf32>
    %48 = vector.extract_strided_slice %2 {offsets = [5, 0], sizes = [1, 128], strides = [1, 1]} : vector<9x128xf32> to vector<1x128xf32>
    %49 = vector.shape_cast %48 : vector<1x128xf32> to vector<128xf32>
    %50 = vector.extract_strided_slice %33 {offsets = [0, 2, 0], sizes = [8, 16, 128], strides = [1, 1, 1]} : vector<8x18x128xf32> to vector<8x16x128xf32>
    %51 = vector.shape_cast %49 : vector<128xf32> to vector<1x1x128xf32>
    %52 = vector.broadcast %51 : vector<1x1x128xf32> to vector<8x16x128xf32>
    %53 = arith.mulf %50, %52 : vector<8x16x128xf32>
    %54 = arith.addf %47, %53 : vector<8x16x128xf32>
    %c2_i32 = arith.constant 2 : i32
    %55 = arith.addi %1, %c2_i32 : i32
    %c0_9 = arith.constant 0 : index
    %56 = arith.index_cast %55 : i32 to index
    %c0_10 = arith.constant 0 : index
    %c0_11 = arith.constant 0 : index
    %57 = vector.load %arg2[%c0_9, %56, %c0_10, %c0_11] : memref<1x18x18x128xf32, #tpu.memory_space<vmem>>, vector<1x8x18x128xf32>
    %58 = vector.shape_cast %57 : vector<1x8x18x128xf32> to vector<8x18x128xf32>
    %59 = vector.extract_strided_slice %2 {offsets = [6, 0], sizes = [1, 128], strides = [1, 1]} : vector<9x128xf32> to vector<1x128xf32>
    %60 = vector.shape_cast %59 : vector<1x128xf32> to vector<128xf32>
    %61 = vector.extract_strided_slice %58 {offsets = [0, 0, 0], sizes = [8, 16, 128], strides = [1, 1, 1]} : vector<8x18x128xf32> to vector<8x16x128xf32>
    %62 = vector.shape_cast %60 : vector<128xf32> to vector<1x1x128xf32>
    %63 = vector.broadcast %62 : vector<1x1x128xf32> to vector<8x16x128xf32>
    %64 = arith.mulf %61, %63 : vector<8x16x128xf32>
    %65 = arith.addf %54, %64 : vector<8x16x128xf32>
    %66 = vector.extract_strided_slice %2 {offsets = [7, 0], sizes = [1, 128], strides = [1, 1]} : vector<9x128xf32> to vector<1x128xf32>
    %67 = vector.shape_cast %66 : vector<1x128xf32> to vector<128xf32>
    %68 = vector.extract_strided_slice %58 {offsets = [0, 1, 0], sizes = [8, 16, 128], strides = [1, 1, 1]} : vector<8x18x128xf32> to vector<8x16x128xf32>
    %69 = vector.shape_cast %67 : vector<128xf32> to vector<1x1x128xf32>
    %70 = vector.broadcast %69 : vector<1x1x128xf32> to vector<8x16x128xf32>
    %71 = arith.mulf %68, %70 : vector<8x16x128xf32>
    %72 = arith.addf %65, %71 : vector<8x16x128xf32>
    %73 = vector.extract_strided_slice %2 {offsets = [8, 0], sizes = [1, 128], strides = [1, 1]} : vector<9x128xf32> to vector<1x128xf32>
    %74 = vector.shape_cast %73 : vector<1x128xf32> to vector<128xf32>
    %75 = vector.extract_strided_slice %58 {offsets = [0, 2, 0], sizes = [8, 16, 128], strides = [1, 1, 1]} : vector<8x18x128xf32> to vector<8x16x128xf32>
    %76 = vector.shape_cast %74 : vector<128xf32> to vector<1x1x128xf32>
    %77 = vector.broadcast %76 : vector<1x1x128xf32> to vector<8x16x128xf32>
    %78 = arith.mulf %75, %77 : vector<8x16x128xf32>
    %79 = arith.addf %72, %78 : vector<8x16x128xf32>
    %80 = vector.shape_cast %79 : vector<8x16x128xf32> to vector<128x128xf32>
    %cst_12 = arith.constant dense<0.000000e+00> : vector<128x128xf32>
    %81 = tpu.matmul %80, %3, %cst_12 {dimension_numbers = #tpu.dot_dimension_numbers<[1], [0], [0], [1], [0, 0, 1, 1], [], []>} : vector<128x128xf32>, vector<128x128xf32>, vector<128x128xf32> -> vector<128x128xf32>
    %82 = vector.shape_cast %81 : vector<128x128xf32> to vector<1x8x16x128xf32>
    %c0_13 = arith.constant 0 : index
    %c0_14 = arith.constant 0 : index
    %c0_15 = arith.constant 0 : index
    %c0_16 = arith.constant 0 : index
    %83 = vector.load %arg5[%c0_13, %c0_14, %c0_15, %c0_16] : memref<1x8x16x128xf32, #tpu.memory_space<vmem>>, vector<1x8x16x128xf32>
    tpu.vector_store %arg5[%c0_13, %c0_14, %c0_15, %c0_16], %82 {strides = array<i32>} : memref<1x8x16x128xf32, #tpu.memory_space<vmem>>, vector<1x8x16x128xf32>,
    return
  }
  func.func @transform_0(%arg0: i32, %arg1: i32) -> (i32, i32, i32, i32) {
    %c0_i32 = arith.constant 0 : i32
    %c0_i32_0 = arith.constant 0 : i32
    %c0_i32_1 = arith.constant 0 : i32
    %c0_i32_2 = arith.constant 0 : i32
    return %arg0, %c0_i32, %c0_i32_0, %c0_i32_1 : i32, i32, i32, i32
  }
  func.func @transform_1(%arg0: i32, %arg1: i32) -> (i32, i32) {
    %c0_i32 = arith.constant 0 : i32
    %c0_i32_0 = arith.constant 0 : i32
    %c0_i32_1 = arith.constant 0 : i32
    return %c0_i32, %c0_i32_0 : i32, i32
  }
  func.func @transform_2(%arg0: i32, %arg1: i32) -> (i32, i32) {
    %c0_i32 = arith.constant 0 : i32
    %c0_i32_0 = arith.constant 0 : i32
    %c0_i32_1 = arith.constant 0 : i32
    return %c0_i32, %c0_i32_0 : i32, i32
  }
  func.func @transform_3(%arg0: i32, %arg1: i32) -> (i32, i32, i32, i32) {
    %c0_i32 = arith.constant 0 : i32
    %c0_i32_0 = arith.constant 0 : i32
    %c0_i32_1 = arith.constant 0 : i32
    return %arg0, %arg1, %c0_i32, %c0_i32_0 : i32, i32, i32, i32
  }
}

</mosaic_0001>

<llo_original>
// kernel: tpu_custom_call.1
$region0: #{tpu_custom_call.1}
  #allocation0 [shape = 'u32[]', space=smem, size = 0x4, offset = 0x4, fixed_abs, tag = 'smem constant byte address 0x4 - core index']
  #allocation1 [shape = 'u32[144,128]{1,0:T(1,128)}', space=vmem, size = 0x12000, scoped, tag = 'internal scratch']
  %s0 = inlined_call_operand.vmem [shape: f32[2,18,18,128], index: 0, kind: input, shape index: {}]
  %s1 = inlined_call_operand.vmem [shape: f32[9,128], index: 1, kind: input, shape index: {}]
  %s2 = inlined_call_operand.vmem [shape: f32[128,128], index: 2, kind: input, shape index: {}]
  %s3 = inlined_call_operand.hbm [shape: f32[2,16,16,128], index: 3, kind: output, shape index: {}]
  %s4 = sld [smem:[#allocation0]]
  $region45: #{tpu_custom_call.1} parent=0
    _
  %s6 = ssub.s32 1, %s4
  %s7 = scalar_select 0, %s6, %s4
  $region1: #{tpu_custom_call.1} parent=0
    #allocation2 [shape = 'u8[131072]{0}', space=vmem, size = 0x20000, scoped, tag = 'output window, operand 0']
    #allocation3 [shape = 's32[2]{0}', space=sflag, size = 0x8, scoped, tag = 'scoped memory for tpu_custom_call.1']
    %8 = vsyncpa [#allocation3], 0
    %s9 = scalar_lea.sflag [#allocation3], 1
    %10 = vsyncpa %s9, 0
    loop: start=0, step=1, limit=6
    $region2: #{tpu_custom_call.1} parent=1 // loop_pre_header
      _
    $region3: #{tpu_custom_call.1} parent=1 // loop_header
      %s12 = sphi 0, %s16
      %p13 = scmp.ge.s32.totalorder %s12, 6
      %s19 = sphi 0, %s31
      %s20 = sphi 0, %s27
      %s21 = sphi 0, %s19
      %s22 = sphi 0, %s20
      %s23 = sphi 0, %s21
      %s24 = sphi 0, %s22
      %s34 = sphi 0, %s36
      %s37 = sphi 0, %s34
      %s38 = sphi 0, %s37
      %s54 = sphi 0, %s38
      %s58 = sphi 0, %s58
      %s60 = sphi 0, %s58
      %s61 = sphi 0, %s60
      %s75 = sphi 0, %s61
      %s79 = sphi 0, %s79
      %s81 = sphi 0, %s79
      %s82 = sphi 0, %s81
      %s96 = sphi 0, %s82
      %s104 = sphi 0, %s106
      %s107 = sphi 0, %s104
      %s108 = sphi 0, %s107
      %s124 = sphi 0, %s108
    $region4: #{tpu_custom_call.1} parent=1 // loop_header_branch
      %15 = sbr.rel (%p13) target = $region8
    $region5: #{tpu_custom_call.1} parent=1 // loop_body
      %s17 = ssub.s32 %s12, 1
      %s18 = ssub.s32 %s12, 2
      %s25 = sadd.s32 1, %s20
      %p26 = scmp.ge.s32.totalorder %s25, 2
      %s27 = scalar_select %p26, 0, %s25
      %s28 = sadd.s32 1, %s19
      %s29 = scalar_select %p26, %s28, %s19
      %p30 = scmp.ge.s32.totalorder %s29, 2
      %s31 = scalar_select %p30, 0, %s29
      %s32 = ssub.s32 %s19, %s31
      %p33 = scmp.eq.s32.totalorder %s32, 0
      %s35 = sadd.s32 %s34, 1
      %s36 = scalar_select %p33, %s34, %s35
      %p39 = pneg %p33
      %p40 = scmp.eq.s32.totalorder %s12, 3
      %p41 = por %p39, %p40
      %p42 = scmp.ne.s32.totalorder %s34, %s37
      %p43 = scmp.eq.s32.totalorder %s12, 0
      %p44 = por %p42, %p43
      %p45 = scmp.ne.s32.totalorder %s34, %s37
      %p46 = scmp.eq.s32.totalorder %s17, 3
      %p47 = por %p45, %p46
      %p48 = scmp.ne.s32.totalorder %s37, %s38
      %p49 = scmp.eq.s32.totalorder %s17, 0
      %p50 = por %p48, %p49
      %p51 = scmp.ne.s32.totalorder %s37, %s38
      %p52 = scmp.eq.s32.totalorder %s18, 3
      %p53 = por %p51, %p52
      %p55 = scmp.ne.s32.totalorder %s38, %s54
      %p56 = scmp.eq.s32.totalorder %s18, 0
      %p57 = por %p55, %p56
      %s59 = sadd.s32 %s58, 1
      %p62 = scmp.eq.s32.totalorder %s12, 3
      %p63 = scmp.ne.s32.totalorder %s58, %s60
      %p64 = scmp.eq.s32.totalorder %s12, 0
      %p65 = por %p63, %p64
      %p66 = scmp.ne.s32.totalorder %s58, %s60
      %p67 = scmp.eq.s32.totalorder %s17, 3
      %p68 = por %p66, %p67
      %p69 = scmp.ne.s32.totalorder %s60, %s61
      %p70 = scmp.eq.s32.totalorder %s17, 0
      %p71 = por %p69, %p70
      %p72 = scmp.ne.s32.totalorder %s60, %s61
      %p73 = scmp.eq.s32.totalorder %s18, 3
      %p74 = por %p72, %p73
      %p76 = scmp.ne.s32.totalorder %s61, %s75
      %p77 = scmp.eq.s32.totalorder %s18, 0
      %p78 = por %p76, %p77
      %s80 = sadd.s32 %s79, 1
      %p83 = scmp.eq.s32.totalorder %s12, 3
      %p84 = scmp.ne.s32.totalorder %s79, %s81
      %p85 = scmp.eq.s32.totalorder %s12, 0
      %p86 = por %p84, %p85
      %p87 = scmp.ne.s32.totalorder %s79, %s81
      %p88 = scmp.eq.s32.totalorder %s17, 3
      %p89 = por %p87, %p88
      %p90 = scmp.ne.s32.totalorder %s81, %s82
      %p91 = scmp.eq.s32.totalorder %s17, 0
      %p92 = por %p90, %p91
      %p93 = scmp.ne.s32.totalorder %s81, %s82
      %p94 = scmp.eq.s32.totalorder %s18, 3
      %p95 = por %p93, %p94
      %p97 = scmp.ne.s32.totalorder %s82, %s96
      %p98 = scmp.eq.s32.totalorder %s18, 0
      %p99 = por %p97, %p98
      %s100 = ssub.s32 %s19, %s31
      %s101 = ssub.s32 %s20, %s27
      %s102 = sor.u32 %s100, %s101
      %p103 = scmp.eq.s32.totalorder %s102, 0
      %s105 = sadd.s32 %s104, 1
      %s106 = scalar_select %p103, %s104, %s105
      %p109 = pneg %p103
      %p110 = scmp.eq.s32.totalorder %s12, 3
      %p111 = por %p109, %p110
      %p112 = scmp.ne.s32.totalorder %s104, %s107
      %p113 = scmp.eq.s32.totalorder %s12, 0
      %p114 = por %p112, %p113
      %p115 = scmp.ne.s32.totalorder %s104, %s107
      %p116 = scmp.eq.s32.totalorder %s17, 3
      %p117 = por %p115, %p116
      %p118 = scmp.ne.s32.totalorder %s107, %s108
      %p119 = scmp.eq.s32.totalorder %s17, 0
      %p120 = por %p118, %p119
      %p121 = scmp.ne.s32.totalorder %s107, %s108
      %p122 = scmp.eq.s32.totalorder %s18, 3
      %p123 = por %p121, %p122
      %p125 = scmp.ne.s32.totalorder %s108, %s124
      %p126 = scmp.eq.s32.totalorder %s18, 0
      %p127 = por %p125, %p126
      %p128 = scmp.le.s32.totalorder 1, %s12
      %p129 = scmp.lt.s32.totalorder %s12, 5
      %p130 = pnand %p128, %p129
      %p131 = pneg %p130
      // Predicated region
      $region9: #{tpu_custom_call.1} parent=5 // pred_check
        _
      $region10: #{tpu_custom_call.1} parent=5 // pred_check_branch
        %133 = sbr.rel (%p130) target = $region12
      $region11: #{tpu_custom_call.1} parent=5 // pred_region
        %s134 = ssub.s32 %s12, 1
        // Predicated region
        $region13: #{tpu_custom_call.1} parent=11 // pred_check
          %p135 = pneg %p71
        $region14: #{tpu_custom_call.1} parent=11 // pred_check_branch
          %137 = sbr.rel (%p135) target = $region16
        $region15: #{tpu_custom_call.1} parent=11 // pred_region
          _
        $region16: #{tpu_custom_call.1} parent=11 // pred_fallthru
          _
        // Predicated region
        $region17: #{tpu_custom_call.1} parent=11 // pred_check
          %p138 = pneg %p92
        $region18: #{tpu_custom_call.1} parent=11 // pred_check_branch
          %140 = sbr.rel (%p138) target = $region20
        $region19: #{tpu_custom_call.1} parent=11 // pred_region
          _
        $region20: #{tpu_custom_call.1} parent=11 // pred_fallthru
          _
      $region12: #{tpu_custom_call.1} parent=5 // pred_fallthru
        _
      %p141 = scmp.lt.s32.totalorder %s12, 4
      // Predicated region
      $region21: #{tpu_custom_call.1} parent=5 // pred_check
        %p142 = pneg %p141
      $region22: #{tpu_custom_call.1} parent=5 // pred_check_branch
        %144 = sbr.rel (%p142) target = $region24
      $region23: #{tpu_custom_call.1} parent=5 // pred_region
        // Predicated region
        $region25: #{tpu_custom_call.1} parent=23 // pred_check
          %p145 = pneg %p44
        $region26: #{tpu_custom_call.1} parent=23 // pred_check_branch
          %147 = sbr.rel (%p145) target = $region28
        $region27: #{tpu_custom_call.1} parent=23 // pred_region
          %p148 = scmp.lt.s32.totalorder %s19, 1
          %s149 = scalar_select %p148, %s19, 1
          %s150 = smul.addr %s149, 54
          %s151 = smul.addr %s150, 8
          %s152 = scalar_lea.vmem %s0, %s151
        $region28: #{tpu_custom_call.1} parent=23 // pred_fallthru
          _
      $region24: #{tpu_custom_call.1} parent=5 // pred_fallthru
        _
      %p153 = scmp.le.s32.totalorder 1, %s12
      %p154 = scmp.lt.s32.totalorder %s12, 5
      %p155 = pnand %p153, %p154
      %p156 = pneg %p155
      // Predicated region
      $region29: #{tpu_custom_call.1} parent=5 // pred_check
        _
      $region30: #{tpu_custom_call.1} parent=5 // pred_check_branch
        %158 = sbr.rel (%p155) target = $region32
      $region31: #{tpu_custom_call.1} parent=5 // pred_region
        %s159 = ssub.s32 %s12, 1
        %p160 = scmp.lt.s32.totalorder %s21, 1
        %s161 = scalar_select %p160, %s21, 1
        %s162 = smul.addr %s161, 54
        %s163 = smul.addr %s162, 8
        %s164 = scalar_lea.vmem %s0, %s163
        %p165 = pneg %p50
        %p166 = pneg %p47
        %p167 = pneg %p71
        %p168 = pneg %p68
        %p169 = pneg %p92
        %p170 = pneg %p89
        %p171 = pneg %p120
        %p172 = pneg %p117
        %s173 = sand.u32 %s107, 1
        %s174 = scalar_lea.sflag [#allocation3], %s173
        %s175 = sand.u32 %s107, 1
        %s176 = smul.addr %s175, 128
        %s177 = scalar_lea.vmem [#allocation2], %s176
        %p178 = scmp.lt.s32.totalorder %s21, 1
        %s179 = scalar_select %p178, %s21, 1
        %s180 = smul.addr %s179, 54
        %s181 = smul.addr %s180, 8
        %s182 = scalar_lea.vmem %s0, %s181
        %s183 = smul.u32 8, %s22
        %s184 = smul.u32 %s22, 8
        %v185 = vld [vmem:[%s1] sm:$0xff]
        %v186 = vld [vmem:[%s1 + $0x8] sm:$0x1]
        %v187 = vld [vmem:[%s2] sm:$0xff]
        %v188 = vld [vmem:[%s2 + $0x8] sm:$0xff]
        %v189 = vld [vmem:[%s2 + $0x10] sm:$0xff]
        %v190 = vld [vmem:[%s2 + $0x18] sm:$0xff]
        %v191 = vld [vmem:[%s2 + $0x20] sm:$0xff]
        %v192 = vld [vmem:[%s2 + $0x28] sm:$0xff]
        %v193 = vld [vmem:[%s2 + $0x30] sm:$0xff]
        %v194 = vld [vmem:[%s2 + $0x38] sm:$0xff]
        %v195 = vld [vmem:[%s2 + $0x40] sm:$0xff]
        %v196 = vld [vmem:[%s2 + $0x48] sm:$0xff]
        %v197 = vld [vmem:[%s2 + $0x50] sm:$0xff]
        %v198 = vld [vmem:[%s2 + $0x58] sm:$0xff]
        %v199 = vld [vmem:[%s2 + $0x60] sm:$0xff]
        %v200 = vld [vmem:[%s2 + $0x68] sm:$0xff]
        %v201 = vld [vmem:[%s2 + $0x70] sm:$0xff]
        %v202 = vld [vmem:[%s2 + $0x78] sm:$0xff]
        %s203 = smul.u32 %s184, 24
        %s204 = scalar_lea.vmem %s182, %s203
        %v205 = vld [vmem:[%s204] sm:$0xff]
        %v206 = vld [vmem:[%s204 + $0x8] sm:$0xff]
        %v207 = vld [vmem:[%s204 + $0x10] sm:$0x3]
        %v208 = vld [vmem:[%s204 + $0x18] sm:$0xff]
        %v209 = vld [vmem:[%s204 + $0x20] sm:$0xff]
        %v210 = vld [vmem:[%s204 + $0x28] sm:$0x3]
        %v211 = vld [vmem:[%s204 + $0x30] sm:$0xff]
        %v212 = vld [vmem:[%s204 + $0x38] sm:$0xff]
        %v213 = vld [vmem:[%s204 + $0x40] sm:$0x3]
        %v214 = vld [vmem:[%s204 + $0x48] sm:$0xff]
        %v215 = vld [vmem:[%s204 + $0x50] sm:$0xff]
        %v216 = vld [vmem:[%s204 + $0x58] sm:$0x3]
        %v217 = vld [vmem:[%s204 + $0x60] sm:$0xff]
        %v218 = vld [vmem:[%s204 + $0x68] sm:$0xff]
        %v219 = vld [vmem:[%s204 + $0x70] sm:$0x3]
        %v220 = vld [vmem:[%s204 + $0x78] sm:$0xff]
        %v221 = vld [vmem:[%s204 + $0x80] sm:$0xff]
        %v222 = vld [vmem:[%s204 + $0x88] sm:$0x3]
        %v223 = vld [vmem:[%s204 + $0x90] sm:$0xff]
        %v224 = vld [vmem:[%s204 + $0x98] sm:$0xff]
        %v225 = vld [vmem:[%s204 + $0xa0] sm:$0x3]
        %v226 = vld [vmem:[%s204 + $0xa8] sm:$0xff]
        %v227 = vld [vmem:[%s204 + $0xb0] sm:$0xff]
        %v228 = vld [vmem:[%s204 + $0xb8] sm:$0x3]
        %v229 = vlaneseq
        %v230 = vshrl.u32 %v229, 7
        %v231 = vsub.s32 0, %v230
        %v232 = vrot.slane %v185, %v231
        %v233 = vmul.f32 %v205, %v232
        %v234 = vmul.f32 %v206, %v232
        %v235 = vmul.f32 %v208, %v232
        %v236 = vmul.f32 %v209, %v232
        %v237 = vmul.f32 %v211, %v232
        %v238 = vmul.f32 %v212, %v232
        %v239 = vmul.f32 %v214, %v232
        %v240 = vmul.f32 %v215, %v232
        %v241 = vmul.f32 %v217, %v232
        %v242 = vmul.f32 %v218, %v232
        %v243 = vmul.f32 %v220, %v232
        %v244 = vmul.f32 %v221, %v232
        %v245 = vmul.f32 %v223, %v232
        %v246 = vmul.f32 %v224, %v232
        %v247 = vmul.f32 %v226, %v232
        %v248 = vmul.f32 %v227, %v232
        %v249 = vadd.f32 %v233, 0.0
        %v250 = vadd.f32 %v234, 0.0
        %v251 = vadd.f32 %v235, 0.0
        %v252 = vadd.f32 %v236, 0.0
        %v253 = vadd.f32 %v237, 0.0
        %v254 = vadd.f32 %v238, 0.0
        %v255 = vadd.f32 %v239, 0.0
        %v256 = vadd.f32 %v240, 0.0
        %v257 = vadd.f32 %v241, 0.0
        %v258 = vadd.f32 %v242, 0.0
        %v259 = vadd.f32 %v243, 0.0
        %v260 = vadd.f32 %v244, 0.0
        %v261 = vadd.f32 %v245, 0.0
        %v262 = vadd.f32 %v246, 0.0
        %v263 = vadd.f32 %v247, 0.0
        %v264 = vadd.f32 %v248, 0.0
        %v265 = vlaneseq
        %v266 = vshrl.u32 %v265, 7
        %v267 = vsub.s32 1, %v266
        %v268 = vrot.slane %v185, %v267
        %v269 = vmul.f32 %v205, %v268
        %v270 = vmul.f32 %v206, %v268
        %v271 = vmul.f32 %v207, %v268
        %v272 = vmul.f32 %v208, %v268
        %v273 = vmul.f32 %v209, %v268
        %v274 = vmul.f32 %v210, %v268
        %v275 = vmul.f32 %v211, %v268
        %v276 = vmul.f32 %v212, %v268
        %v277 = vmul.f32 %v213, %v268
        %v278 = vmul.f32 %v214, %v268
        %v279 = vmul.f32 %v215, %v268
        %v280 = vmul.f32 %v216, %v268
        %v281 = vmul.f32 %v217, %v268
        %v282 = vmul.f32 %v218, %v268
        %v283 = vmul.f32 %v219, %v268
        %v284 = vmul.f32 %v220, %v268
        %v285 = vmul.f32 %v221, %v268
        %v286 = vmul.f32 %v222, %v268
        %v287 = vmul.f32 %v223, %v268
        %v288 = vmul.f32 %v224, %v268
        %v289 = vmul.f32 %v225, %v268
        %v290 = vmul.f32 %v226, %v268
        %v291 = vmul.f32 %v227, %v268
        %v292 = vmul.f32 %v228, %v268
        %vm317 = vcmask 1046528
        %v318 = vrot.slane %v269, 1
        %v319 = vrot.slane %v270, 1
        %v320 = vsel %vm317, %v318, %v319
        %v321 = vrot.slane %v271, 1
        %v322 = vsel %vm317, %v319, %v321
        %v323 = vrot.slane %v272, 1
        %v324 = vrot.slane %v273, 1
        %v325 = vsel %vm317, %v323, %v324
        %v326 = vrot.slane %v274, 1
        %v327 = vsel %vm317, %v324, %v326
        %v328 = vrot.slane %v275, 1
        %v329 = vrot.slane %v276, 1
        %v330 = vsel %vm317, %v328, %v329
        %v331 = vrot.slane %v277, 1
        %v332 = vsel %vm317, %v329, %v331
        %v333 = vrot.slane %v278, 1
        %v334 = vrot.slane %v279, 1
        %v335 = vsel %vm317, %v333, %v334
        %v336 = vrot.slane %v280, 1
        %v337 = vsel %vm317, %v334, %v336
        %v338 = vrot.slane %v281, 1
        %v339 = vrot.slane %v282, 1
        %v340 = vsel %vm317, %v338, %v339
        %v341 = vrot.slane %v283, 1
        %v342 = vsel %vm317, %v339, %v341
        %v343 = vrot.slane %v284, 1
        %v344 = vrot.slane %v285, 1
        %v345 = vsel %vm317, %v343, %v344
        %v346 = vrot.slane %v286, 1
        %v347 = vsel %vm317, %v344, %v346
        %v348 = vrot.slane %v287, 1
        %v349 = vrot.slane %v288, 1
        %v350 = vsel %vm317, %v348, %v349
        %v351 = vrot.slane %v289, 1
        %v352 = vsel %vm317, %v349, %v351
        %v353 = vrot.slane %v290, 1
        %v354 = vrot.slane %v291, 1
        %v355 = vsel %vm317, %v353, %v354
        %v356 = vrot.slane %v292, 1
        %v357 = vsel %vm317, %v354, %v356
        %v374 = vadd.f32 %v249, %v320
        %v375 = vadd.f32 %v250, %v322
        %v376 = vadd.f32 %v251, %v325
        %v377 = vadd.f32 %v252, %v327
        %v378 = vadd.f32 %v253, %v330
        %v379 = vadd.f32 %v254, %v332
        %v380 = vadd.f32 %v255, %v335
        %v381 = vadd.f32 %v256, %v337
        %v382 = vadd.f32 %v257, %v340
        %v383 = vadd.f32 %v258, %v342
        %v384 = vadd.f32 %v259, %v345
        %v385 = vadd.f32 %v260, %v347
        %v386 = vadd.f32 %v261, %v350
        %v387 = vadd.f32 %v262, %v352
        %v388 = vadd.f32 %v263, %v355
        %v389 = vadd.f32 %v264, %v357
        %v390 = vlaneseq
        %v391 = vshrl.u32 %v390, 7
        %v392 = vsub.s32 2, %v391
        %v393 = vrot.slane %v185, %v392
        %v394 = vmul.f32 %v205, %v393
        %v395 = vmul.f32 %v206, %v393
        %v396 = vmul.f32 %v207, %v393
        %v397 = vmul.f32 %v208, %v393
        %v398 = vmul.f32 %v209, %v393
        %v399 = vmul.f32 %v210, %v393
        %v400 = vmul.f32 %v211, %v393
        %v401 = vmul.f32 %v212, %v393
        %v402 = vmul.f32 %v213, %v393
        %v403 = vmul.f32 %v214, %v393
        %v404 = vmul.f32 %v215, %v393
        %v405 = vmul.f32 %v216, %v393
        %v406 = vmul.f32 %v217, %v393
        %v407 = vmul.f32 %v218, %v393
        %v408 = vmul.f32 %v219, %v393
        %v409 = vmul.f32 %v220, %v393
        %v410 = vmul.f32 %v221, %v393
        %v411 = vmul.f32 %v222, %v393
        %v412 = vmul.f32 %v223, %v393
        %v413 = vmul.f32 %v224, %v393
        %v414 = vmul.f32 %v225, %v393
        %v415 = vmul.f32 %v226, %v393
        %v416 = vmul.f32 %v227, %v393
        %v417 = vmul.f32 %v228, %v393
        %vm442 = vcmask 1045504
        %v443 = vrot.slane %v394, 2
        %v444 = vrot.slane %v395, 2
        %v445 = vsel %vm442, %v443, %v444
        %v446 = vrot.slane %v396, 2
        %v447 = vsel %vm442, %v444, %v446
        %v448 = vrot.slane %v397, 2
        %v449 = vrot.slane %v398, 2
        %v450 = vsel %vm442, %v448, %v449
        %v451 = vrot.slane %v399, 2
        %v452 = vsel %vm442, %v449, %v451
        %v453 = vrot.slane %v400, 2
        %v454 = vrot.slane %v401, 2
        %v455 = vsel %vm442, %v453, %v454
        %v456 = vrot.slane %v402, 2
        %v457 = vsel %vm442, %v454, %v456
        %v458 = vrot.slane %v403, 2
        %v459 = vrot.slane %v404, 2
        %v460 = vsel %vm442, %v458, %v459
        %v461 = vrot.slane %v405, 2
        %v462 = vsel %vm442, %v459, %v461
        %v463 = vrot.slane %v406, 2
        %v464 = vrot.slane %v407, 2
        %v465 = vsel %vm442, %v463, %v464
        %v466 = vrot.slane %v408, 2
        %v467 = vsel %vm442, %v464, %v466
        %v468 = vrot.slane %v409, 2
        %v469 = vrot.slane %v410, 2
        %v470 = vsel %vm442, %v468, %v469
        %v471 = vrot.slane %v411, 2
        %v472 = vsel %vm442, %v469, %v471
        %v473 = vrot.slane %v412, 2
        %v474 = vrot.slane %v413, 2
        %v475 = vsel %vm442, %v473, %v474
        %v476 = vrot.slane %v414, 2
        %v477 = vsel %vm442, %v474, %v476
        %v478 = vrot.slane %v415, 2
        %v479 = vrot.slane %v416, 2
        %v480 = vsel %vm442, %v478, %v479
        %v481 = vrot.slane %v417, 2
        %v482 = vsel %vm442, %v479, %v481
        %v499 = vadd.f32 %v374, %v445
        %v500 = vadd.f32 %v375, %v447
        %v501 = vadd.f32 %v376, %v450
        %v502 = vadd.f32 %v377, %v452
        %v503 = vadd.f32 %v378, %v455
        %v504 = vadd.f32 %v379, %v457
        %v505 = vadd.f32 %v380, %v460
        %v506 = vadd.f32 %v381, %v462
        %v507 = vadd.f32 %v382, %v465
        %v508 = vadd.f32 %v383, %v467
        %v509 = vadd.f32 %v384, %v470
        %v510 = vadd.f32 %v385, %v472
        %v511 = vadd.f32 %v386, %v475
        %v512 = vadd.f32 %v387, %v477
        %v513 = vadd.f32 %v388, %v480
        %v514 = vadd.f32 %v389, %v482
        %s515 = sadd.s32 %s184, 1
        %s516 = smul.u32 %s515, 24
        %s517 = scalar_lea.vmem %s182, %s516
        %v518 = vld [vmem:[%s517] sm:$0xff]
        %v519 = vld [vmem:[%s517 + $0x8] sm:$0xff]
        %v520 = vld [vmem:[%s517 + $0x10] sm:$0x3]
        %v521 = vld [vmem:[%s517 + $0x18] sm:$0xff]
        %v522 = vld [vmem:[%s517 + $0x20] sm:$0xff]
        %v523 = vld [vmem:[%s517 + $0x28] sm:$0x3]
        %v524 = vld [vmem:[%s517 + $0x30] sm:$0xff]
        %v525 = vld [vmem:[%s517 + $0x38] sm:$0xff]
        %v526 = vld [vmem:[%s517 + $0x40] sm:$0x3]
        %v527 = vld [vmem:[%s517 + $0x48] sm:$0xff]
        %v528 = vld [vmem:[%s517 + $0x50] sm:$0xff]
        %v529 = vld [vmem:[%s517 + $0x58] sm:$0x3]
        %v530 = vld [vmem:[%s517 + $0x60] sm:$0xff]
        %v531 = vld [vmem:[%s517 + $0x68] sm:$0xff]
        %v532 = vld [vmem:[%s517 + $0x70] sm:$0x3]
        %v533 = vld [vmem:[%s517 + $0x78] sm:$0xff]
        %v534 = vld [vmem:[%s517 + $0x80] sm:$0xff]
        %v535 = vld [vmem:[%s517 + $0x88] sm:$0x3]
        %v536 = vld [vmem:[%s517 + $0x90] sm:$0xff]
        %v537 = vld [vmem:[%s517 + $0x98] sm:$0xff]
        %v538 = vld [vmem:[%s517 + $0xa0] sm:$0x3]
        %v539 = vld [vmem:[%s517 + $0xa8] sm:$0xff]
        %v540 = vld [vmem:[%s517 + $0xb0] sm:$0xff]
        %v541 = vld [vmem:[%s517 + $0xb8] sm:$0x3]
        %v542 = vlaneseq
        %v543 = vshrl.u32 %v542, 7
        %v544 = vsub.s32 3, %v543
        %v545 = vrot.slane %v185, %v544
        %v546 = vmul.f32 %v518, %v545
        %v547 = vmul.f32 %v519, %v545
        %v548 = vmul.f32 %v521, %v545
        %v549 = vmul.f32 %v522, %v545
        %v550 = vmul.f32 %v524, %v545
        %v551 = vmul.f32 %v525, %v545
        %v552 = vmul.f32 %v527, %v545
        %v553 = vmul.f32 %v528, %v545
        %v554 = vmul.f32 %v530, %v545
        %v555 = vmul.f32 %v531, %v545
        %v556 = vmul.f32 %v533, %v545
        %v557 = vmul.f32 %v534, %v545
        %v558 = vmul.f32 %v536, %v545
        %v559 = vmul.f32 %v537, %v545
        %v560 = vmul.f32 %v539, %v545
        %v561 = vmul.f32 %v540, %v545
        %v562 = vadd.f32 %v499, %v546
        %v563 = vadd.f32 %v500, %v547
        %v564 = vadd.f32 %v501, %v548
        %v565 = vadd.f32 %v502, %v549
        %v566 = vadd.f32 %v503, %v550
        %v567 = vadd.f32 %v504, %v551
        %v568 = vadd.f32 %v505, %v552
        %v569 = vadd.f32 %v506, %v553
        %v570 = vadd.f32 %v507, %v554
        %v571 = vadd.f32 %v508, %v555
        %v572 = vadd.f32 %v509, %v556
        %v573 = vadd.f32 %v510, %v557
        %v574 = vadd.f32 %v511, %v558
        %v575 = vadd.f32 %v512, %v559
        %v576 = vadd.f32 %v513, %v560
        %v577 = vadd.f32 %v514, %v561
        %v578 = vlaneseq
        %v579 = vshrl.u32 %v578, 7
        %v580 = vsub.s32 4, %v579
        %v581 = vrot.slane %v185, %v580
        %v582 = vmul.f32 %v518, %v581
        %v583 = vmul.f32 %v519, %v581
        %v584 = vmul.f32 %v520, %v581
        %v585 = vmul.f32 %v521, %v581
        %v586 = vmul.f32 %v522, %v581
        %v587 = vmul.f32 %v523, %v581
        %v588 = vmul.f32 %v524, %v581
        %v589 = vmul.f32 %v525, %v581
        %v590 = vmul.f32 %v526, %v581
        %v591 = vmul.f32 %v527, %v581
        %v592 = vmul.f32 %v528, %v581
        %v593 = vmul.f32 %v529, %v581
        %v594 = vmul.f32 %v530, %v581
        %v595 = vmul.f32 %v531, %v581
        %v596 = vmul.f32 %v532, %v581
        %v597 = vmul.f32 %v533, %v581
        %v598 = vmul.f32 %v534, %v581
        %v599 = vmul.f32 %v535, %v581
        %v600 = vmul.f32 %v536, %v581
        %v601 = vmul.f32 %v537, %v581
        %v602 = vmul.f32 %v538, %v581
        %v603 = vmul.f32 %v539, %v581
        %v604 = vmul.f32 %v540, %v581
        %v605 = vmul.f32 %v541, %v581
        %v630 = vrot.slane %v582, 1
        %v631 = vrot.slane %v583, 1
        %v632 = vsel %vm317, %v630, %v631
        %v633 = vrot.slane %v584, 1
        %v634 = vsel %vm317, %v631, %v633
        %v635 = vrot.slane %v585, 1
        %v636 = vrot.slane %v586, 1
        %v637 = vsel %vm317, %v635, %v636
        %v638 = vrot.slane %v587, 1
        %v639 = vsel %vm317, %v636, %v638
        %v640 = vrot.slane %v588, 1
        %v641 = vrot.slane %v589, 1
        %v642 = vsel %vm317, %v640, %v641
        %v643 = vrot.slane %v590, 1
        %v644 = vsel %vm317, %v641, %v643
        %v645 = vrot.slane %v591, 1
        %v646 = vrot.slane %v592, 1
        %v647 = vsel %vm317, %v645, %v646
        %v648 = vrot.slane %v593, 1
        %v649 = vsel %vm317, %v646, %v648
        %v650 = vrot.slane %v594, 1
        %v651 = vrot.slane %v595, 1
        %v652 = vsel %vm317, %v650, %v651
        %v653 = vrot.slane %v596, 1
        %v654 = vsel %vm317, %v651, %v653
        %v655 = vrot.slane %v597, 1
        %v656 = vrot.slane %v598, 1
        %v657 = vsel %vm317, %v655, %v656
        %v658 = vrot.slane %v599, 1
        %v659 = vsel %vm317, %v656, %v658
        %v660 = vrot.slane %v600, 1
        %v661 = vrot.slane %v601, 1
        %v662 = vsel %vm317, %v660, %v661
        %v663 = vrot.slane %v602, 1
        %v664 = vsel %vm317, %v661, %v663
        %v665 = vrot.slane %v603, 1
        %v666 = vrot.slane %v604, 1
        %v667 = vsel %vm317, %v665, %v666
        %v668 = vrot.slane %v605, 1
        %v669 = vsel %vm317, %v666, %v668
        %v686 = vadd.f32 %v562, %v632
        %v687 = vadd.f32 %v563, %v634
        %v688 = vadd.f32 %v564, %v637
        %v689 = vadd.f32 %v565, %v639
        %v690 = vadd.f32 %v566, %v642
        %v691 = vadd.f32 %v567, %v644
        %v692 = vadd.f32 %v568, %v647
        %v693 = vadd.f32 %v569, %v649
        %v694 = vadd.f32 %v570, %v652
        %v695 = vadd.f32 %v571, %v654
        %v696 = vadd.f32 %v572, %v657
        %v697 = vadd.f32 %v573, %v659
        %v698 = vadd.f32 %v574, %v662
        %v699 = vadd.f32 %v575, %v664
        %v700 = vadd.f32 %v576, %v667
        %v701 = vadd.f32 %v577, %v669
        %v702 = vlaneseq
        %v703 = vshrl.u32 %v702, 7
        %v704 = vsub.s32 5, %v703
        %v705 = vrot.slane %v185, %v704
        %v706 = vmul.f32 %v518, %v705
        %v707 = vmul.f32 %v519, %v705
        %v708 = vmul.f32 %v520, %v705
        %v709 = vmul.f32 %v521, %v705
        %v710 = vmul.f32 %v522, %v705
        %v711 = vmul.f32 %v523, %v705
        %v712 = vmul.f32 %v524, %v705
        %v713 = vmul.f32 %v525, %v705
        %v714 = vmul.f32 %v526, %v705
        %v715 = vmul.f32 %v527, %v705
        %v716 = vmul.f32 %v528, %v705
        %v717 = vmul.f32 %v529, %v705
        %v718 = vmul.f32 %v530, %v705
        %v719 = vmul.f32 %v531, %v705
        %v720 = vmul.f32 %v532, %v705
        %v721 = vmul.f32 %v533, %v705
        %v722 = vmul.f32 %v534, %v705
        %v723 = vmul.f32 %v535, %v705
        %v724 = vmul.f32 %v536, %v705
        %v725 = vmul.f32 %v537, %v705
        %v726 = vmul.f32 %v538, %v705
        %v727 = vmul.f32 %v539, %v705
        %v728 = vmul.f32 %v540, %v705
        %v729 = vmul.f32 %v541, %v705
        %v754 = vrot.slane %v706, 2
        %v755 = vrot.slane %v707, 2
        %v756 = vsel %vm442, %v754, %v755
        %v757 = vrot.slane %v708, 2
        %v758 = vsel %vm442, %v755, %v757
        %v759 = vrot.slane %v709, 2
        %v760 = vrot.slane %v710, 2
        %v761 = vsel %vm442, %v759, %v760
        %v762 = vrot.slane %v711, 2
        %v763 = vsel %vm442, %v760, %v762
        %v764 = vrot.slane %v712, 2
        %v765 = vrot.slane %v713, 2
        %v766 = vsel %vm442, %v764, %v765
        %v767 = vrot.slane %v714, 2
        %v768 = vsel %vm442, %v765, %v767
        %v769 = vrot.slane %v715, 2
        %v770 = vrot.slane %v716, 2
        %v771 = vsel %vm442, %v769, %v770
        %v772 = vrot.slane %v717, 2
        %v773 = vsel %vm442, %v770, %v772
        %v774 = vrot.slane %v718, 2
        %v775 = vrot.slane %v719, 2
        %v776 = vsel %vm442, %v774, %v775
        %v777 = vrot.slane %v720, 2
        %v778 = vsel %vm442, %v775, %v777
        %v779 = vrot.slane %v721, 2
        %v780 = vrot.slane %v722, 2
        %v781 = vsel %vm442, %v779, %v780
        %v782 = vrot.slane %v723, 2
        %v783 = vsel %vm442, %v780, %v782
        %v784 = vrot.slane %v724, 2
        %v785 = vrot.slane %v725, 2
        %v786 = vsel %vm442, %v784, %v785
        %v787 = vrot.slane %v726, 2
        %v788 = vsel %vm442, %v785, %v787
        %v789 = vrot.slane %v727, 2
        %v790 = vrot.slane %v728, 2
        %v791 = vsel %vm442, %v789, %v790
        %v792 = vrot.slane %v729, 2
        %v793 = vsel %vm442, %v790, %v792
        %v810 = vadd.f32 %v686, %v756
        %v811 = vadd.f32 %v687, %v758
        %v812 = vadd.f32 %v688, %v761
        %v813 = vadd.f32 %v689, %v763
        %v814 = vadd.f32 %v690, %v766
        %v815 = vadd.f32 %v691, %v768
        %v816 = vadd.f32 %v692, %v771
        %v817 = vadd.f32 %v693, %v773
        %v818 = vadd.f32 %v694, %v776
        %v819 = vadd.f32 %v695, %v778
        %v820 = vadd.f32 %v696, %v781
        %v821 = vadd.f32 %v697, %v783
        %v822 = vadd.f32 %v698, %v786
        %v823 = vadd.f32 %v699, %v788
        %v824 = vadd.f32 %v700, %v791
        %v825 = vadd.f32 %v701, %v793
        %s826 = sadd.s32 %s184, 2
        %s827 = smul.u32 %s826, 24
        %s828 = scalar_lea.vmem %s182, %s827
        %v829 = vld [vmem:[%s828] sm:$0xff]
        %v830 = vld [vmem:[%s828 + $0x8] sm:$0xff]
        %v831 = vld [vmem:[%s828 + $0x10] sm:$0x3]
        %v832 = vld [vmem:[%s828 + $0x18] sm:$0xff]
        %v833 = vld [vmem:[%s828 + $0x20] sm:$0xff]
        %v834 = vld [vmem:[%s828 + $0x28] sm:$0x3]
        %v835 = vld [vmem:[%s828 + $0x30] sm:$0xff]
        %v836 = vld [vmem:[%s828 + $0x38] sm:$0xff]
        %v837 = vld [vmem:[%s828 + $0x40] sm:$0x3]
        %v838 = vld [vmem:[%s828 + $0x48] sm:$0xff]
        %v839 = vld [vmem:[%s828 + $0x50] sm:$0xff]
        %v840 = vld [vmem:[%s828 + $0x58] sm:$0x3]
        %v841 = vld [vmem:[%s828 + $0x60] sm:$0xff]
        %v842 = vld [vmem:[%s828 + $0x68] sm:$0xff]
        %v843 = vld [vmem:[%s828 + $0x70] sm:$0x3]
        %v844 = vld [vmem:[%s828 + $0x78] sm:$0xff]
        %v845 = vld [vmem:[%s828 + $0x80] sm:$0xff]
        %v846 = vld [vmem:[%s828 + $0x88] sm:$0x3]
        %v847 = vld [vmem:[%s828 + $0x90] sm:$0xff]
        %v848 = vld [vmem:[%s828 + $0x98] sm:$0xff]
        %v849 = vld [vmem:[%s828 + $0xa0] sm:$0x3]
        %v850 = vld [vmem:[%s828 + $0xa8] sm:$0xff]
        %v851 = vld [vmem:[%s828 + $0xb0] sm:$0xff]
        %v852 = vld [vmem:[%s828 + $0xb8] sm:$0x3]
        %v853 = vlaneseq
        %v854 = vshrl.u32 %v853, 7
        %v855 = vsub.s32 6, %v854
        %v856 = vrot.slane %v185, %v855
        %v857 = vmul.f32 %v829, %v856
        %v858 = vmul.f32 %v830, %v856
        %v859 = vmul.f32 %v832, %v856
        %v860 = vmul.f32 %v833, %v856
        %v861 = vmul.f32 %v835, %v856
        %v862 = vmul.f32 %v836, %v856
        %v863 = vmul.f32 %v838, %v856
        %v864 = vmul.f32 %v839, %v856
        %v865 = vmul.f32 %v841, %v856
        %v866 = vmul.f32 %v842, %v856
        %v867 = vmul.f32 %v844, %v856
        %v868 = vmul.f32 %v845, %v856
        %v869 = vmul.f32 %v847, %v856
        %v870 = vmul.f32 %v848, %v856
        %v871 = vmul.f32 %v850, %v856
        %v872 = vmul.f32 %v851, %v856
        %v873 = vadd.f32 %v810, %v857
        %v874 = vadd.f32 %v811, %v858
        %v875 = vadd.f32 %v812, %v859
        %v876 = vadd.f32 %v813, %v860
        %v877 = vadd.f32 %v814, %v861
        %v878 = vadd.f32 %v815, %v862
        %v879 = vadd.f32 %v816, %v863
        %v880 = vadd.f32 %v817, %v864
        %v881 = vadd.f32 %v818, %v865
        %v882 = vadd.f32 %v819, %v866
        %v883 = vadd.f32 %v820, %v867
        %v884 = vadd.f32 %v821, %v868
        %v885 = vadd.f32 %v822, %v869
        %v886 = vadd.f32 %v823, %v870
        %v887 = vadd.f32 %v824, %v871
        %v888 = vadd.f32 %v825, %v872
        %v889 = vlaneseq
        %v890 = vshrl.u32 %v889, 7
        %v891 = vsub.s32 7, %v890
        %v892 = vrot.slane %v185, %v891
        %v893 = vmul.f32 %v829, %v892
        %v894 = vmul.f32 %v830, %v892
        %v895 = vmul.f32 %v831, %v892
        %v896 = vmul.f32 %v832, %v892
        %v897 = vmul.f32 %v833, %v892
        %v898 = vmul.f32 %v834, %v892
        %v899 = vmul.f32 %v835, %v892
        %v900 = vmul.f32 %v836, %v892
        %v901 = vmul.f32 %v837, %v892
        %v902 = vmul.f32 %v838, %v892
        %v903 = vmul.f32 %v839, %v892
        %v904 = vmul.f32 %v840, %v892
        %v905 = vmul.f32 %v841, %v892
        %v906 = vmul.f32 %v842, %v892
        %v907 = vmul.f32 %v843, %v892
        %v908 = vmul.f32 %v844, %v892
        %v909 = vmul.f32 %v845, %v892
        %v910 = vmul.f32 %v846, %v892
        %v911 = vmul.f32 %v847, %v892
        %v912 = vmul.f32 %v848, %v892
        %v913 = vmul.f32 %v849, %v892
        %v914 = vmul.f32 %v850, %v892
        %v915 = vmul.f32 %v851, %v892
        %v916 = vmul.f32 %v852, %v892
        %v941 = vrot.slane %v893, 1
        %v942 = vrot.slane %v894, 1
        %v943 = vsel %vm317, %v941, %v942
        %v944 = vrot.slane %v895, 1
        %v945 = vsel %vm317, %v942, %v944
        %v946 = vrot.slane %v896, 1
        %v947 = vrot.slane %v897, 1
        %v948 = vsel %vm317, %v946, %v947
        %v949 = vrot.slane %v898, 1
        %v950 = vsel %vm317, %v947, %v949
        %v951 = vrot.slane %v899, 1
        %v952 = vrot.slane %v900, 1
        %v953 = vsel %vm317, %v951, %v952
        %v954 = vrot.slane %v901, 1
        %v955 = vsel %vm317, %v952, %v954
        %v956 = vrot.slane %v902, 1
        %v957 = vrot.slane %v903, 1
        %v958 = vsel %vm317, %v956, %v957
        %v959 = vrot.slane %v904, 1
        %v960 = vsel %vm317, %v957, %v959
        %v961 = vrot.slane %v905, 1
        %v962 = vrot.slane %v906, 1
        %v963 = vsel %vm317, %v961, %v962
        %v964 = vrot.slane %v907, 1
        %v965 = vsel %vm317, %v962, %v964
        %v966 = vrot.slane %v908, 1
        %v967 = vrot.slane %v909, 1
        %v968 = vsel %vm317, %v966, %v967
        %v969 = vrot.slane %v910, 1
        %v970 = vsel %vm317, %v967, %v969
        %v971 = vrot.slane %v911, 1
        %v972 = vrot.slane %v912, 1
        %v973 = vsel %vm317, %v971, %v972
        %v974 = vrot.slane %v913, 1
        %v975 = vsel %vm317, %v972, %v974
        %v976 = vrot.slane %v914, 1
        %v977 = vrot.slane %v915, 1
        %v978 = vsel %vm317, %v976, %v977
        %v979 = vrot.slane %v916, 1
        %v980 = vsel %vm317, %v977, %v979
        %v997 = vadd.f32 %v873, %v943
        %v998 = vadd.f32 %v874, %v945
        %v999 = vadd.f32 %v875, %v948
        %v1000 = vadd.f32 %v876, %v950
        %v1001 = vadd.f32 %v877, %v953
        %v1002 = vadd.f32 %v878, %v955
        %v1003 = vadd.f32 %v879, %v958
        %v1004 = vadd.f32 %v880, %v960
        %v1005 = vadd.f32 %v881, %v963
        %v1006 = vadd.f32 %v882, %v965
        %v1007 = vadd.f32 %v883, %v968
        %v1008 = vadd.f32 %v884, %v970
        %v1009 = vadd.f32 %v885, %v973
        %v1010 = vadd.f32 %v886, %v975
        %v1011 = vadd.f32 %v887, %v978
        %v1012 = vadd.f32 %v888, %v980
        %v1013 = vlaneseq
        %v1014 = vshrl.u32 %v1013, 7
        %v1015 = vsub.s32 0, %v1014
        %v1016 = vrot.slane %v186, %v1015
        %v1017 = vmul.f32 %v829, %v1016
        %v1018 = vmul.f32 %v830, %v1016
        %v1019 = vmul.f32 %v831, %v1016
        %v1020 = vmul.f32 %v832, %v1016
        %v1021 = vmul.f32 %v833, %v1016
        %v1022 = vmul.f32 %v834, %v1016
        %v1023 = vmul.f32 %v835, %v1016
        %v1024 = vmul.f32 %v836, %v1016
        %v1025 = vmul.f32 %v837, %v1016
        %v1026 = vmul.f32 %v838, %v1016
        %v1027 = vmul.f32 %v839, %v1016
        %v1028 = vmul.f32 %v840, %v1016
        %v1029 = vmul.f32 %v841, %v1016
        %v1030 = vmul.f32 %v842, %v1016
        %v1031 = vmul.f32 %v843, %v1016
        %v1032 = vmul.f32 %v844, %v1016
        %v1033 = vmul.f32 %v845, %v1016
        %v1034 = vmul.f32 %v846, %v1016
        %v1035 = vmul.f32 %v847, %v1016
        %v1036 = vmul.f32 %v848, %v1016
        %v1037 = vmul.f32 %v849, %v1016
        %v1038 = vmul.f32 %v850, %v1016
        %v1039 = vmul.f32 %v851, %v1016
        %v1040 = vmul.f32 %v852, %v1016
        %v1065 = vrot.slane %v1017, 2
        %v1066 = vrot.slane %v1018, 2
        %v1067 = vsel %vm442, %v1065, %v1066
        %v1068 = vrot.slane %v1019, 2
        %v1069 = vsel %vm442, %v1066, %v1068
        %v1070 = vrot.slane %v1020, 2
        %v1071 = vrot.slane %v1021, 2
        %v1072 = vsel %vm442, %v1070, %v1071
        %v1073 = vrot.slane %v1022, 2
        %v1074 = vsel %vm442, %v1071, %v1073
        %v1075 = vrot.slane %v1023, 2
        %v1076 = vrot.slane %v1024, 2
        %v1077 = vsel %vm442, %v1075, %v1076
        %v1078 = vrot.slane %v1025, 2
        %v1079 = vsel %vm442, %v1076, %v1078
        %v1080 = vrot.slane %v1026, 2
        %v1081 = vrot.slane %v1027, 2
        %v1082 = vsel %vm442, %v1080, %v1081
        %v1083 = vrot.slane %v1028, 2
        %v1084 = vsel %vm442, %v1081, %v1083
        %v1085 = vrot.slane %v1029, 2
        %v1086 = vrot.slane %v1030, 2
        %v1087 = vsel %vm442, %v1085, %v1086
        %v1088 = vrot.slane %v1031, 2
        %v1089 = vsel %vm442, %v1086, %v1088
        %v1090 = vrot.slane %v1032, 2
        %v1091 = vrot.slane %v1033, 2
        %v1092 = vsel %vm442, %v1090, %v1091
        %v1093 = vrot.slane %v1034, 2
        %v1094 = vsel %vm442, %v1091, %v1093
        %v1095 = vrot.slane %v1035, 2
        %v1096 = vrot.slane %v1036, 2
        %v1097 = vsel %vm442, %v1095, %v1096
        %v1098 = vrot.slane %v1037, 2
        %v1099 = vsel %vm442, %v1096, %v1098
        %v1100 = vrot.slane %v1038, 2
        %v1101 = vrot.slane %v1039, 2
        %v1102 = vsel %vm442, %v1100, %v1101
        %v1103 = vrot.slane %v1040, 2
        %v1104 = vsel %vm442, %v1101, %v1103
        %v1121 = vadd.f32 %v997, %v1067
        %v1122 = vadd.f32 %v998, %v1069
        %v1123 = vadd.f32 %v999, %v1072
        %v1124 = vadd.f32 %v1000, %v1074
        %v1125 = vadd.f32 %v1001, %v1077
        %v1126 = vadd.f32 %v1002, %v1079
        %v1127 = vadd.f32 %v1003, %v1082
        %v1128 = vadd.f32 %v1004, %v1084
        %v1129 = vadd.f32 %v1005, %v1087
        %v1130 = vadd.f32 %v1006, %v1089
        %v1131 = vadd.f32 %v1007, %v1092
        %v1132 = vadd.f32 %v1008, %v1094
        %v1133 = vadd.f32 %v1009, %v1097
        %v1134 = vadd.f32 %v1010, %v1099
        %v1135 = vadd.f32 %v1011, %v1102
        %v1136 = vadd.f32 %v1012, %v1104
        %1137 = vmatprep.subr.mxu0 0.0
        %1138 = vmatpush1.msra.mxu0 %v202
        %1139 = vmatprep.subr.mxu0 0.0
        %1140 = vmatpush1.msra.mxu0 %v201
        %1141 = vmatprep.subr.mxu0 0.0
        %1142 = vmatpush1.msra.mxu0 %v200
        %1143 = vmatprep.subr.mxu0 0.0
        %1144 = vmatpush1.msra.mxu0 %v199
        %1145 = vmatprep.subr.mxu0 0.0
        %1146 = vmatpush1.msra.mxu0 %v198
        %1147 = vmatprep.subr.mxu0 0.0
        %1148 = vmatpush1.msra.mxu0 %v197
        %1149 = vmatprep.subr.mxu0 0.0
        %1150 = vmatpush1.msra.mxu0 %v196
        %1151 = vmatprep.subr.mxu0 0.0
        %1152 = vmatpush1.msra.mxu0 %v195
        %1153 = vmatprep.subr.mxu0 0.0
        %1154 = vmatpush1.msra.mxu0 %v194
        %1155 = vmatprep.subr.mxu0 0.0
        %1156 = vmatpush1.msra.mxu0 %v193
        %1157 = vmatprep.subr.mxu0 0.0
        %1158 = vmatpush1.msra.mxu0 %v192
        %1159 = vmatprep.subr.mxu0 0.0
        %1160 = vmatpush1.msra.mxu0 %v191
        %1161 = vmatprep.subr.mxu0 0.0
        %1162 = vmatpush1.msra.mxu0 %v190
        %1163 = vmatprep.subr.mxu0 0.0
        %1164 = vmatpush1.msra.mxu0 %v189
        %1165 = vmatprep.subr.mxu0 0.0
        %1166 = vmatpush1.msra.mxu0 %v188
        %1167 = vmatprep.subr.mxu0 0.0
        %1168 = vmatpush1.msra.mxu0 %v187
        %1169 = vmatprep.subr.mxu0 0.0
        %1170 = vmatpush2.msra.mxu0 0.0
        %1171 = vmatprep.subr.mxu0 0.0
        %1172 = vmatpush2.msra.mxu0 0.0
        %1173 = vmatprep.subr.mxu0 0.0
        %1174 = vmatpush2.msra.mxu0 0.0
        %1175 = vmatprep.subr.mxu0 0.0
        %1176 = vmatpush2.msra.mxu0 0.0
        %1177 = vmatprep.subr.mxu0 0.0
        %1178 = vmatpush2.msra.mxu0 0.0
        %1179 = vmatprep.subr.mxu0 0.0
        %1180 = vmatpush2.msra.mxu0 0.0
        %1181 = vmatprep.subr.mxu0 0.0
        %1182 = vmatpush2.msra.mxu0 0.0
        %1183 = vmatprep.subr.mxu0 0.0
        %1184 = vmatpush2.msra.mxu0 0.0
        %1185 = vmatprep.subr.mxu0 0.0
        %1186 = vmatpush2.msra.mxu0 0.0
        %1187 = vmatprep.subr.mxu0 0.0
        %1188 = vmatpush2.msra.mxu0 0.0
        %1189 = vmatprep.subr.mxu0 0.0
        %1190 = vmatpush2.msra.mxu0 0.0
        %1191 = vmatprep.subr.mxu0 0.0
        %1192 = vmatpush2.msra.mxu0 0.0
        %1193 = vmatprep.subr.mxu0 0.0
        %1194 = vmatpush2.msra.mxu0 0.0
        %1195 = vmatprep.subr.mxu0 0.0
        %1196 = vmatpush2.msra.mxu0 0.0
        %1197 = vmatprep.subr.mxu0 0.0
        %1198 = vmatpush2.msra.mxu0 0.0
        %1199 = vmatprep.subr.mxu0 0.0
        %1200 = vmatpush2.msra.mxu0 0.0
        %1201 = vmatprep.mubr.f32.mxu0 0.0
        %1202 = vmatmul.mubr.f32.gmra.mxu0 %v1121
        %v1203 = vpop.f32.mrf.mxu0
        %v1204 = vadd.f32 0.0, %v1203
        %v1205 = vpop.f32.mrf.mxu0
        %1206 = vmatprep.mubr.f32.mxu0 0.0
        %1207 = vmatmul.mubr.f32.gmra.mxu0 %v1122
        %v1208 = vpop.f32.mrf.mxu0
        %v1209 = vadd.f32 0.0, %v1208
        %v1210 = vpop.f32.mrf.mxu0
        %1211 = vmatprep.mubr.f32.mxu0 0.0
        %1212 = vmatmul.mubr.f32.gmra.mxu0 %v1123
        %v1213 = vpop.f32.mrf.mxu0
        %v1214 = vadd.f32 0.0, %v1213
        %v1215 = vpop.f32.mrf.mxu0
        %1216 = vmatprep.mubr.f32.mxu0 0.0
        %1217 = vmatmul.mubr.f32.gmra.mxu0 %v1124
        %v1218 = vpop.f32.mrf.mxu0
        %v1219 = vadd.f32 0.0, %v1218
        %v1220 = vpop.f32.mrf.mxu0
        %1221 = vmatprep.mubr.f32.mxu0 0.0
        %1222 = vmatmul.mubr.f32.gmra.mxu0 %v1125
        %v1223 = vpop.f32.mrf.mxu0
        %v1224 = vadd.f32 0.0, %v1223
        %v1225 = vpop.f32.mrf.mxu0
        %1226 = vmatprep.mubr.f32.mxu0 0.0
        %1227 = vmatmul.mubr.f32.gmra.mxu0 %v1126
        %v1228 = vpop.f32.mrf.mxu0
        %v1229 = vadd.f32 0.0, %v1228
        %v1230 = vpop.f32.mrf.mxu0
        %1231 = vmatprep.mubr.f32.mxu0 0.0
        %1232 = vmatmul.mubr.f32.gmra.mxu0 %v1127
        %v1233 = vpop.f32.mrf.mxu0
        %v1234 = vadd.f32 0.0, %v1233
        %v1235 = vpop.f32.mrf.mxu0
        %1236 = vmatprep.mubr.f32.mxu0 0.0
        %1237 = vmatmul.mubr.f32.gmra.mxu0 %v1128
        %v1238 = vpop.f32.mrf.mxu0
        %v1239 = vadd.f32 0.0, %v1238
        %v1240 = vpop.f32.mrf.mxu0
        %1241 = vmatprep.mubr.f32.mxu0 0.0
        %1242 = vmatmul.mubr.f32.gmra.mxu0 %v1129
        %v1243 = vpop.f32.mrf.mxu0
        %v1244 = vadd.f32 0.0, %v1243
        %v1245 = vpop.f32.mrf.mxu0
        %1246 = vmatprep.mubr.f32.mxu0 0.0
        %1247 = vmatmul.mubr.f32.gmra.mxu0 %v1130
        %v1248 = vpop.f32.mrf.mxu0
        %v1249 = vadd.f32 0.0, %v1248
        %v1250 = vpop.f32.mrf.mxu0
        %1251 = vmatprep.mubr.f32.mxu0 0.0
        %1252 = vmatmul.mubr.f32.gmra.mxu0 %v1131
        %v1253 = vpop.f32.mrf.mxu0
        %v1254 = vadd.f32 0.0, %v1253
        %v1255 = vpop.f32.mrf.mxu0
        %1256 = vmatprep.mubr.f32.mxu0 0.0
        %1257 = vmatmul.mubr.f32.gmra.mxu0 %v1132
        %v1258 = vpop.f32.mrf.mxu0
        %v1259 = vadd.f32 0.0, %v1258
        %v1260 = vpop.f32.mrf.mxu0
        %1261 = vmatprep.mubr.f32.mxu0 0.0
        %1262 = vmatmul.mubr.f32.gmra.mxu0 %v1133
        %v1263 = vpop.f32.mrf.mxu0
        %v1264 = vadd.f32 0.0, %v1263
        %v1265 = vpop.f32.mrf.mxu0
        %1266 = vmatprep.mubr.f32.mxu0 0.0
        %1267 = vmatmul.mubr.f32.gmra.mxu0 %v1134
        %v1268 = vpop.f32.mrf.mxu0
        %v1269 = vadd.f32 0.0, %v1268
        %v1270 = vpop.f32.mrf.mxu0
        %1271 = vmatprep.mubr.f32.mxu0 0.0
        %1272 = vmatmul.mubr.f32.gmra.mxu0 %v1135
        %v1273 = vpop.f32.mrf.mxu0
        %v1274 = vadd.f32 0.0, %v1273
        %v1275 = vpop.f32.mrf.mxu0
        %1276 = vmatprep.mubr.f32.mxu0 0.0
        %1277 = vmatmul.mubr.f32.gmra.mxu0 %v1136
        %v1278 = vpop.f32.mrf.mxu0
        %v1279 = vadd.f32 0.0, %v1278
        %v1280 = vpop.f32.mrf.mxu0
        %1281 = vdwg.mxu0
        %1282 = vst [vmem:[%s177] sm:$0xff] %v1204
        %1283 = vst [vmem:[%s177 + $0x8] sm:$0xff] %v1209
        %1284 = vst [vmem:[%s177 + $0x10] sm:$0xff] %v1214
        %1285 = vst [vmem:[%s177 + $0x18] sm:$0xff] %v1219
        %1286 = vst [vmem:[%s177 + $0x20] sm:$0xff] %v1224
        %1287 = vst [vmem:[%s177 + $0x28] sm:$0xff] %v1229
        %1288 = vst [vmem:[%s177 + $0x30] sm:$0xff] %v1234
        %1289 = vst [vmem:[%s177 + $0x38] sm:$0xff] %v1239
        %1290 = vst [vmem:[%s177 + $0x40] sm:$0xff] %v1244
        %1291 = vst [vmem:[%s177 + $0x48] sm:$0xff] %v1249
        %1292 = vst [vmem:[%s177 + $0x50] sm:$0xff] %v1254
        %1293 = vst [vmem:[%s177 + $0x58] sm:$0xff] %v1259
        %1294 = vst [vmem:[%s177 + $0x60] sm:$0xff] %v1264
        %1295 = vst [vmem:[%s177 + $0x68] sm:$0xff] %v1269
        %1296 = vst [vmem:[%s177 + $0x70] sm:$0xff] %v1274
        %1297 = vst [vmem:[%s177 + $0x78] sm:$0xff] %v1279
        %s1298 = sand.u32 %s107, 1
        %s1299 = scalar_lea.sflag [#allocation3], %s1298
        %s1300 = sand.u32 %s107, 1
        %s1301 = smul.addr %s1300, 128
        %s1302 = scalar_lea.vmem [#allocation2], %s1301
        // Predicated region
        $region33: #{tpu_custom_call.1} parent=31 // pred_check
          %p1303 = pneg %p117
        $region34: #{tpu_custom_call.1} parent=31 // pred_check_branch
          %1305 = sbr.rel (%p1303) target = $region36
        $region35: #{tpu_custom_call.1} parent=31 // pred_region
          %s1306 = smul.u32 8, %s22
          %s1308 = ssub.s32 2048, 2048
          %1309 = vsyncadd %s1299, %s1308
          %s1310 = smul.addr %s1306, 2
          %s1311 = smul.addr %s21, 32
          %s1312 = sadd.s32 %s1310, %s1311
          %s1313 = smul.addr %s1312, 128
          %s1314 = scalar_lea.hbm %s3, %s1313
          %s1315 = sshll.u32 %s1302, 4
          %s1316 = int_to_ptr.vmem [resolvable:$true] %s1315
          %1321 = dma.vmem_to_hbm [thread:$0]  %s1316, 2048, %s1314, %s1299, 128, 128, 8
        $region36: #{tpu_custom_call.1} parent=31 // pred_fallthru
          _
      $region32: #{tpu_custom_call.1} parent=5 // pred_fallthru
        _
      %p1322 = scmp.le.s32.totalorder 2, %s12
      // Predicated region
      $region37: #{tpu_custom_call.1} parent=5 // pred_check
        %p1323 = pneg %p1322
      $region38: #{tpu_custom_call.1} parent=5 // pred_check_branch
        %1325 = sbr.rel (%p1323) target = $region40
      $region39: #{tpu_custom_call.1} parent=5 // pred_region
        %s1326 = ssub.s32 %s12, 2
        // Predicated region
        $region41: #{tpu_custom_call.1} parent=39 // pred_check
          %p1327 = pneg %p123
        $region42: #{tpu_custom_call.1} parent=39 // pred_check_branch
          %1329 = sbr.rel (%p1327) target = $region44
        $region43: #{tpu_custom_call.1} parent=39 // pred_region
          %s1330 = sand.u32 %s108, 1
          %s1331 = scalar_lea.sflag [#allocation3], %s1330
          %s1332 = sand.u32 %s108, 1
          %s1333 = smul.addr %s1332, 128
          %s1334 = scalar_lea.vmem [#allocation2], %s1333
          %1335 = dma.done %s1331, 2048
        $region44: #{tpu_custom_call.1} parent=39 // pred_fallthru
          _
      $region40: #{tpu_custom_call.1} parent=5 // pred_fallthru
        _
    $region6: #{tpu_custom_call.1} parent=1 // loop_footer
      %s16 = sadd.s32 1, %s12
    $region7: #{tpu_custom_call.1} parent=1 // loop_footer_branch
      %11 = sbr.rel target = $region3
    $region8: #{tpu_custom_call.1} parent=1 // loop_exit
      _
    %1336 = vsyncpa [#allocation3], 1
    %s1337 = scalar_lea.sflag [#allocation3], 1
    %1338 = vsyncpa %s1337, 1

</llo_original>
